<compile_context>
chip_gen: v7x
topology: tpu7x:2x2x1
jax: 0.10.0
libtpu: 0.0.40
codegen_flags: <defaults>
</compile_context>

<pallas_src>
import functools

import jax
import jax.numpy as jnp
import numpy as np
from jax.experimental import pallas as pl
from jax.experimental.pallas import tpu as pltpu


def _round_up(x, m):
    return ((x + m - 1) // m) * m


def _fused_kernel(x_ref, w1_ref, w2_ref, b_ref, o_ref, *, H1p, Np):
    x = x_ref[...].astype(jnp.bfloat16)            # [tile_b, n_in], cast in-kernel
    b1 = b_ref[0:1, :H1p]                          # [1, H1p]  f32
    b2 = b_ref[1:2, :Np]                           # [1, Np]   f32

    # Fully folded pre-ReLU affine chain: linear_in -> V-proj -> out_proj -> mlp[0].
    m = jnp.dot(x, w1_ref[...], preferred_element_type=jnp.float32) + b1
    m = jnp.maximum(m, 0.0)                        # ReLU; Dropout = identity (eval)
    y = jnp.dot(m.astype(jnp.bfloat16), w2_ref[...],
                preferred_element_type=jnp.float32) + b2

    o_ref[...] = y.astype(o_ref.dtype)             # bf16, lane-dense (128-wide) store


def prepare_kernel_params(params):
    """Fold the whole pre-ReLU affine chain, pad feature dims to 128, cast to bf16."""
    n_in, E = params["w_in"].shape
    H1 = params["w1"].shape[1]
    n_out = params["w2"].shape[1]

    # Exact eval-mode fold (done in f32 before the single bf16 cast):
    #   a      = x @ (Win@Wv@Wo) + ((b_in@Wv + b_v)@Wo + b_o)
    #   m_pre  = a @ W1 + b1 = x @ (Win@Wv@Wo@W1) + (b_a@W1 + b1)
    w_a = params["w_in"] @ params["w_v"] @ params["w_o"]                        # [n_in, E]
    b_a = (params["b_in"] @ params["w_v"] + params["b_v"]) @ params["w_o"] + params["b_o"]
    w_fold = w_a @ params["w1"]                                                 # [n_in, H1]
    b_fold = b_a @ params["w1"] + params["b1"]                                  # [1, H1]

    H1p = _round_up(H1, 128)
    Np = _round_up(n_out, 128)
    Wb = max(H1p, Np)

    pad2 = lambda a, r, c: jnp.pad(a, ((0, r - a.shape[0]), (0, c - a.shape[1])))

    biases = jnp.zeros((2, Wb), jnp.float32)
    biases = biases.at[0, :H1].set(b_fold[0])
    biases = biases.at[1, :n_out].set(params["b2"][0])

    return {
        "w1": pad2(w_fold, n_in, H1p).astype(jnp.bfloat16),       # folded pre-ReLU weight
        "w2": pad2(params["w2"], H1p, Np).astype(jnp.bfloat16),   # mlp output weight
        "biases": biases,
        "dims": (n_in, H1, n_out, H1p, Np, Wb),
    }


def _pick_tile_b(B, cap=2048):
    """Single right-sized tile when the batch fits under the cap (minimal per-step
    overhead and padding; ideal for single-TC v5e/v6e and within v5e's 16 MiB
    scoped-VMEM default). Otherwise the smallest EVEN step count whose balanced
    tile fits under the cap (keeps v7x's two TensorCores evenly loaded).
    Tiles are multiples of 16 so the bf16 output stays sublane-aligned."""
    b16 = _round_up(max(B, 16), 16)
    if b16 <= cap:
        return b16
    n_steps = 2
    while _round_up(pl.cdiv(B, n_steps), 16) > cap:
        n_steps += 2
    return _round_up(pl.cdiv(B, n_steps), 16)


def self_attention_mlp(x, params, *, tile_b=None):
    """x: [B, n_in] float32. params: original-layout dict from init_params."""
    kp = prepare_kernel_params(params)
    n_in, H1, n_out, H1p, Np, Wb = kp["dims"]
    B = x.shape[0]
    assert x.shape[1] == n_in

    if tile_b is None:
        tile_b = _pick_tile_b(B)
    grid_b = pl.cdiv(B, tile_b)
    B_pad = grid_b * tile_b

    xf = x if B_pad == B else jnp.pad(x, ((0, B_pad - B), (0, 0)))  # zero rows, sliced later

    kernel = functools.partial(_fused_kernel, H1p=H1p, Np=Np)
    full = lambda i: (0, 0)      # weights / biases: one block, resident across all steps
    row = lambda i: (i, 0)       # activations: tile over batch

    out = pl.pallas_call(
        kernel,
        out_shape=jax.ShapeDtypeStruct((B_pad, Np), jnp.bfloat16),
        grid=(grid_b,),
        in_specs=[
            pl.BlockSpec((tile_b, n_in), row),     # x            (f32, cast in kernel)
            pl.BlockSpec((n_in, H1p), full),       # folded W'    (bf16)
            pl.BlockSpec((H1p, Np), full),         # mlp W2       (bf16)
            pl.BlockSpec((2, Wb), full),           # stacked biases (f32)
        ],
        out_specs=pl.BlockSpec((tile_b, Np), row),
        compiler_params=pltpu.CompilerParams(
            dimension_semantics=("parallel",)),
    )(xf, kp["w1"], kp["w2"], kp["biases"])

    # Slice away batch/lane padding, then widen to f32 (tiny [B, n_out] array).
    return out[:B, :n_out].astype(jnp.float32)


def init_params(key, n_in, n_out, hidden_dims=(64, 64), num_heads=4):
    """Deterministic synthetic parameters mirroring the PyTorch module's shapes."""
    E = hidden_dims[0]
    assert E % num_heads == 0
    ks = jax.random.split(key, 10)
    scale = 0.1

    # nn.Linear(n_in, hidden0): weight (hidden0, n_in), bias (hidden0,)
    w_in_t = jax.random.normal(ks[0], (E, n_in), jnp.float32) * scale
    b_in = jax.random.normal(ks[1], (E,), jnp.float32) * scale

    # nn.MultiheadAttention: in_proj_weight (3E, E) = [Wq; Wk; Wv], in_proj_bias (3E,)
    in_proj_w = jax.random.normal(ks[2], (3 * E, E), jnp.float32) * scale
    in_proj_b = jax.random.normal(ks[3], (3 * E,), jnp.float32) * scale
    w_v_t = in_proj_w[2 * E:3 * E]            # (E, E), PyTorch (out, in) convention
    b_v = in_proj_b[2 * E:3 * E]
    # out_proj: Linear(E, E)
    w_o_t = jax.random.normal(ks[4], (E, E), jnp.float32) * scale
    b_o = jax.random.normal(ks[5], (E,), jnp.float32) * scale

    # mlp: Linear(E, hidden1), Linear(hidden1, n_out)
    w1_t = jax.random.normal(ks[6], (hidden_dims[1], E), jnp.float32) * scale
    b1 = jax.random.normal(ks[7], (hidden_dims[1],), jnp.float32) * scale
    w2_t = jax.random.normal(ks[8], (n_out, hidden_dims[1]), jnp.float32) * scale
    b2 = jax.random.normal(ks[9], (n_out,), jnp.float32) * scale

    # Pre-transpose to [in, out]; biases as [1, out].
    return {
        "w_in": w_in_t.T, "b_in": b_in[None, :],
        "w_v": w_v_t.T, "b_v": b_v[None, :],
        "w_o": w_o_t.T, "b_o": b_o[None, :],
        "w1": w1_t.T, "b1": b1[None, :],
        "w2": w2_t.T, "b2": b2[None, :],
    }


def reference_f32(x, p):
    """Pure-JAX f32 reference of the PyTorch forward (eval mode, unfused)."""
    h = x @ p["w_in"] + p["b_in"]
    v = h @ p["w_v"] + p["b_v"]        # seq_len == 1 -> attention weights == 1 exactly
    a = v @ p["w_o"] + p["b_o"]
    m = jnp.maximum(a @ p["w1"] + p["b1"], 0.0)
    return m @ p["w2"] + p["b2"]


def reference_bf16(x, kp):
    """Numpy reference replicating the kernel's bf16-weight / f32-accumulate math
    (including the bf16 output store)."""
    n_in, H1, n_out, H1p, Np, Wb = kp["dims"]
    f32 = lambda a: np.asarray(jnp.asarray(a, jnp.float32))
    rnd = lambda a: np.asarray(jnp.asarray(a).astype(jnp.bfloat16).astype(jnp.float32))
    b = f32(kp["biases"])
    m = np.maximum(rnd(x) @ f32(kp["w1"]) + b[0:1, :H1p], 0.0)
    y = rnd(m) @ f32(kp["w2"]) + b[1:2, :Np]
    y = rnd(y)                          # kernel stores bf16
    return y[:, :n_out]


if __name__ == "__main__":
    n_in, n_out = 16, 8
    hidden_dims = (64, 64)
    num_heads = 4

    key = jax.random.PRNGKey(0)
    k_x, k_p, k_x2 = jax.random.split(key, 3)
    params = init_params(k_p, n_in, n_out, hidden_dims, num_heads)
    kp = prepare_kernel_params(params)

    # Case 1: ragged small batch -> single right-sized tile (grid_b == 1).
    B = 300
    x = jax.random.normal(k_x, (B, n_in), jnp.float32)
    out = jax.block_until_ready(self_attention_mlp(x, params))
    assert out.shape == (B, n_out)
    np.testing.assert_allclose(np.asarray(out), reference_bf16(x, kp),
                               rtol=3e-3, atol=3e-3)
    np.testing.assert_allclose(np.asarray(out), np.asarray(reference_f32(x, params)),
                               rtol=3e-2, atol=3e-2)

    # Case 2: larger batch -> even, balanced multi-step grid (v7x 2-TC path).
    B2 = 4500
    x2 = jax.random.normal(k_x2, (B2, n_in), jnp.float32)
    out2 = jax.block_until_ready(self_attention_mlp(x2, params))
    assert out2.shape == (B2, n_out)
    np.testing.assert_allclose(np.asarray(out2), reference_bf16(x2, kp),
                               rtol=3e-3, atol=3e-3)

    print("KERNEL_OK")
</pallas_src>

<mosaic_0001>
module attributes {stable_mosaic.version = 11 : i64} {
  func.func @_fused_kernel(%arg0: i32, %arg1: memref<304x16xf32, #tpu.memory_space<vmem>>, %arg2: memref<16x128xbf16, #tpu.memory_space<vmem>>, %arg3: memref<128x128xbf16, #tpu.memory_space<vmem>>, %arg4: memref<2x128xf32, #tpu.memory_space<vmem>>, %arg5: memref<304x128xbf16, #tpu.memory_space<vmem>>) attributes {dimension_semantics = [#tpu.dimension_semantics<parallel>], iteration_bounds = array<i64: 1>, scalar_prefetch = 0 : i64, scratch_operands = 0 : i64, tpu.core_type = #tpu.core_type<tc>, window_params = [{transform_indices = @transform_0, window_bounds = array<i64: 304, 16>}, {pipeline_mode = #tpu.pipeline_mode<synchronous>, transform_indices = @transform_1, window_bounds = array<i64: 16, 128>}, {pipeline_mode = #tpu.pipeline_mode<synchronous>, transform_indices = @transform_2, window_bounds = array<i64: 128, 128>}, {pipeline_mode = #tpu.pipeline_mode<synchronous>, transform_indices = @transform_3, window_bounds = array<i64: 2, 128>}, {transform_indices = @transform_4, window_bounds = array<i64: 304, 128>}]} {
    %c0 = arith.constant 0 : index
    %c0_0 = arith.constant 0 : index
    %0 = vector.load %arg1[%c0, %c0_0] : memref<304x16xf32, #tpu.memory_space<vmem>>, vector<304x16xf32>
    %1 = arith.truncf %0 : vector<304x16xf32> to vector<304x16xbf16>
    %c0_1 = arith.constant 0 : index
    %c0_2 = arith.constant 0 : index
    %2 = vector.load %arg4[%c0_1, %c0_2] : memref<2x128xf32, #tpu.memory_space<vmem>>, vector<1x128xf32>
    %c1 = arith.constant 1 : index
    %c0_3 = arith.constant 0 : index
    %3 = vector.load %arg4[%c1, %c0_3] : memref<2x128xf32, #tpu.memory_space<vmem>>, vector<1x128xf32>
    %c0_4 = arith.constant 0 : index
    %c0_5 = arith.constant 0 : index
    %4 = vector.load %arg2[%c0_4, %c0_5] : memref<16x128xbf16, #tpu.memory_space<vmem>>, vector<16x128xbf16>
    %cst = arith.constant dense<0.000000e+00> : vector<304x128xf32>
    %5 = tpu.matmul %1, %4, %cst {dimension_numbers = #tpu.dot_dimension_numbers<[1], [0], [0], [1], [0, 0, 1, 1], [], []>} : vector<304x16xbf16>, vector<16x128xbf16>, vector<304x128xf32> -> vector<304x128xf32>
    %6 = vector.broadcast %2 : vector<1x128xf32> to vector<304x128xf32>
    %7 = arith.addf %5, %6 : vector<304x128xf32>
    %cst_6 = arith.constant 0.000000e+00 : f32
    %8 = vector.broadcast %cst_6 : f32 to vector<304x128xf32>
    %9 = arith.maximumf %7, %8 : vector<304x128xf32>
    %10 = arith.truncf %9 : vector<304x128xf32> to vector<304x128xbf16>
    %c0_7 = arith.constant 0 : index
    %c0_8 = arith.constant 0 : index
    %11 = vector.load %arg3[%c0_7, %c0_8] : memref<128x128xbf16, #tpu.memory_space<vmem>>, vector<128x128xbf16>
    %cst_9 = arith.constant dense<0.000000e+00> : vector<304x128xf32>
    %12 = tpu.matmul %10, %11, %cst_9 {dimension_numbers = #tpu.dot_dimension_numbers<[1], [0], [0], [1], [0, 0, 1, 1], [], []>} : vector<304x128xbf16>, vector<128x128xbf16>, vector<304x128xf32> -> vector<304x128xf32>
    %13 = vector.broadcast %3 : vector<1x128xf32> to vector<304x128xf32>
    %14 = arith.addf %12, %13 : vector<304x128xf32>
    %15 = arith.truncf %14 : vector<304x128xf32> to vector<304x128xbf16>
    %c0_10 = arith.constant 0 : index
    %c0_11 = arith.constant 0 : index
    %16 = vector.load %arg5[%c0_10, %c0_11] : memref<304x128xbf16, #tpu.memory_space<vmem>>, vector<304x128xbf16>
    tpu.vector_store %arg5[%c0_10, %c0_11], %15 {strides = array<i32>} : memref<304x128xbf16, #tpu.memory_space<vmem>>, vector<304x128xbf16>,
    return
  }
  func.func @transform_0(%arg0: i32) -> (i32, i32) {
    %c0_i32 = arith.constant 0 : i32
    %c0_i32_0 = arith.constant 0 : i32
    return %arg0, %c0_i32 : i32, i32
  }
  func.func @transform_1(%arg0: i32) -> (i32, i32) {
    %c0_i32 = arith.constant 0 : i32
    %c0_i32_0 = arith.constant 0 : i32
    %c0_i32_1 = arith.constant 0 : i32
    return %c0_i32, %c0_i32_0 : i32, i32
  }
  func.func @transform_2(%arg0: i32) -> (i32, i32) {
    %c0_i32 = arith.constant 0 : i32
    %c0_i32_0 = arith.constant 0 : i32
    %c0_i32_1 = arith.constant 0 : i32
    return %c0_i32, %c0_i32_0 : i32, i32
  }
  func.func @transform_3(%arg0: i32) -> (i32, i32) {
    %c0_i32 = arith.constant 0 : i32
    %c0_i32_0 = arith.constant 0 : i32
    %c0_i32_1 = arith.constant 0 : i32
    return %c0_i32, %c0_i32_0 : i32, i32
  }
  func.func @transform_4(%arg0: i32) -> (i32, i32) {
    %c0_i32 = arith.constant 0 : i32
    %c0_i32_0 = arith.constant 0 : i32
    return %arg0, %c0_i32 : i32, i32
  }
}

</mosaic_0001>

<llo_original>
// kernel: tpu_custom_call.1
$region0: #{tpu_custom_call.1}
  #allocation0 [shape = 'u32[]', space=smem, size = 0x4, offset = 0x4, fixed_abs, tag = 'smem constant byte address 0x4 - core index']
  #allocation1 [shape = 'u32[144,128]{1,0:T(1,128)}', space=vmem, size = 0x12000, scoped, tag = 'internal scratch']
  %s0 = inlined_call_operand.vmem [shape: f32[304,16], index: 0, kind: input, shape index: {}]
  %s1 = inlined_call_operand.vmem [shape: bf16[16,128], index: 1, kind: input, shape index: {}]
  %s2 = inlined_call_operand.vmem [shape: bf16[128,128], index: 2, kind: input, shape index: {}]
  %s3 = inlined_call_operand.vmem [shape: f32[2,128], index: 3, kind: input, shape index: {}]
  %s4 = inlined_call_operand.hbm [shape: bf16[304,128], index: 4, kind: output, shape index: {}]
  %s5 = sld [smem:[#allocation0]]
  $region26: #{tpu_custom_call.1} parent=0
    _
  %s7 = ssub.s32 1, %s5
  %s8 = scalar_select 0, %s7, %s5
  $region1: #{tpu_custom_call.1} parent=0
    #allocation2 [shape = 'u8[77824]{0}', space=vmem, size = 0x13000, scoped, tag = 'output window, operand 0, single buffered']
    #allocation3 [shape = 's32[1]{0}', space=sflag, size = 0x4, scoped, tag = 'scoped memory for tpu_custom_call.1']
    %9 = vsyncpa [#allocation3], 0
    // Predicated region
    $region2: #{tpu_custom_call.1} parent=1 // pred_check
      _
    $region3: #{tpu_custom_call.1} parent=1 // pred_check_branch
      %11 = sbr.rel (0) target = $region5
    $region4: #{tpu_custom_call.1} parent=1 // pred_region
      _
    $region5: #{tpu_custom_call.1} parent=1 // pred_fallthru
      _
    // Predicated region
    $region6: #{tpu_custom_call.1} parent=1 // pred_check
      _
    $region7: #{tpu_custom_call.1} parent=1 // pred_check_branch
      %13 = sbr.rel (0) target = $region9
    $region8: #{tpu_custom_call.1} parent=1 // pred_region
      _
    $region9: #{tpu_custom_call.1} parent=1 // pred_fallthru
      _
    // Predicated region
    $region10: #{tpu_custom_call.1} parent=1 // pred_check
      _
    $region11: #{tpu_custom_call.1} parent=1 // pred_check_branch
      %15 = sbr.rel (0) target = $region13
    $region12: #{tpu_custom_call.1} parent=1 // pred_region
      _
    $region13: #{tpu_custom_call.1} parent=1 // pred_fallthru
      _
    // Predicated region
    $region14: #{tpu_custom_call.1} parent=1 // pred_check
      _
    $region15: #{tpu_custom_call.1} parent=1 // pred_check_branch
      %17 = sbr.rel (0) target = $region17
    $region16: #{tpu_custom_call.1} parent=1 // pred_region
      _
    $region17: #{tpu_custom_call.1} parent=1 // pred_fallthru
      _
    %v19 = vld [vmem:[%s0] sm:$0xff]
    %v20 = vld [vmem:[%s0 + $0x8] sm:$0xff]
    %v21 = vld [vmem:[%s0 + $0x10] sm:$0xff]
    %v22 = vld [vmem:[%s0 + $0x18] sm:$0xff]
    %v23 = vld [vmem:[%s0 + $0x20] sm:$0xff]
    %v24 = vld [vmem:[%s0 + $0x28] sm:$0xff]
    %v25 = vld [vmem:[%s0 + $0x30] sm:$0xff]
    %v26 = vld [vmem:[%s0 + $0x38] sm:$0xff]
    %v27 = vld [vmem:[%s0 + $0x40] sm:$0xff]
    %v28 = vld [vmem:[%s0 + $0x48] sm:$0xff]
    %v29 = vld [vmem:[%s0 + $0x50] sm:$0xff]
    %v30 = vld [vmem:[%s0 + $0x58] sm:$0xff]
    %v31 = vld [vmem:[%s0 + $0x60] sm:$0xff]
    %v32 = vld [vmem:[%s0 + $0x68] sm:$0xff]
    %v33 = vld [vmem:[%s0 + $0x70] sm:$0xff]
    %v34 = vld [vmem:[%s0 + $0x78] sm:$0xff]
    %v35 = vld [vmem:[%s0 + $0x80] sm:$0xff]
    %v36 = vld [vmem:[%s0 + $0x88] sm:$0xff]
    %v37 = vld [vmem:[%s0 + $0x90] sm:$0xff]
    %v38 = vld [vmem:[%s0 + $0x98] sm:$0xff]
    %v39 = vld [vmem:[%s0 + $0xa0] sm:$0xff]
    %v40 = vld [vmem:[%s0 + $0xa8] sm:$0xff]
    %v41 = vld [vmem:[%s0 + $0xb0] sm:$0xff]
    %v42 = vld [vmem:[%s0 + $0xb8] sm:$0xff]
    %v43 = vld [vmem:[%s0 + $0xc0] sm:$0xff]
    %v44 = vld [vmem:[%s0 + $0xc8] sm:$0xff]
    %v45 = vld [vmem:[%s0 + $0xd0] sm:$0xff]
    %v46 = vld [vmem:[%s0 + $0xd8] sm:$0xff]
    %v47 = vld [vmem:[%s0 + $0xe0] sm:$0xff]
    %v48 = vld [vmem:[%s0 + $0xe8] sm:$0xff]
    %v49 = vld [vmem:[%s0 + $0xf0] sm:$0xff]
    %v50 = vld [vmem:[%s0 + $0xf8] sm:$0xff]
    %v51 = vld [vmem:[%s0 + $0x100] sm:$0xff]
    %v52 = vld [vmem:[%s0 + $0x108] sm:$0xff]
    %v53 = vld [vmem:[%s0 + $0x110] sm:$0xff]
    %v54 = vld [vmem:[%s0 + $0x118] sm:$0xff]
    %v55 = vld [vmem:[%s0 + $0x120] sm:$0xff]
    %v56 = vld [vmem:[%s0 + $0x128] sm:$0xff]
    %v57 = vpack.c.bf16 %v20, %v19
    %v58 = vpack.c.bf16 %v22, %v21
    %v59 = vpack.c.bf16 %v24, %v23
    %v60 = vpack.c.bf16 %v26, %v25
    %v61 = vpack.c.bf16 %v28, %v27
    %v62 = vpack.c.bf16 %v30, %v29
    %v63 = vpack.c.bf16 %v32, %v31
    %v64 = vpack.c.bf16 %v34, %v33
    %v65 = vpack.c.bf16 %v36, %v35
    %v66 = vpack.c.bf16 %v38, %v37
    %v67 = vpack.c.bf16 %v40, %v39
    %v68 = vpack.c.bf16 %v42, %v41
    %v69 = vpack.c.bf16 %v44, %v43
    %v70 = vpack.c.bf16 %v46, %v45
    %v71 = vpack.c.bf16 %v48, %v47
    %v72 = vpack.c.bf16 %v50, %v49
    %v73 = vpack.c.bf16 %v52, %v51
    %v74 = vpack.c.bf16 %v54, %v53
    %v75 = vpack.c.bf16 %v56, %v55
    %v76 = vld [vmem:[%s3] sm:$0x1]
    %v77 = vld [vmem:[%s3 + $0x1] sm:$0x1]
    %v78 = vld [vmem:[%s1] sm:$0xf]
    %v79 = vld [vmem:[%s1 + $0x4] sm:$0xf]
    %v80 = vlaneseq
    %v81 = vshrl.u32 %v80, 7
    %v82 = vsub.s32 0, %v81
    %v83 = vrot.slane %v76, %v82
    %v86 = vunpack.c.l.b16 %v78
    %v87 = vunpack.c.l.b16 %v79
    %v88 = vpack.c.b16 %v87, %v86
    %vm90 = vcmask 130048
    %v92 = vsel %vm90, %v57, 0
    %v95 = vsel %vm90, %v58, 0
    %v98 = vsel %vm90, %v59, 0
    %v101 = vsel %vm90, %v60, 0
    %v104 = vsel %vm90, %v61, 0
    %v107 = vsel %vm90, %v62, 0
    %v110 = vsel %vm90, %v63, 0
    %v113 = vsel %vm90, %v64, 0
    %v116 = vsel %vm90, %v65, 0
    %v119 = vsel %vm90, %v66, 0
    %v122 = vsel %vm90, %v67, 0
    %v125 = vsel %vm90, %v68, 0
    %v128 = vsel %vm90, %v69, 0
    %v131 = vsel %vm90, %v70, 0
    %v134 = vsel %vm90, %v71, 0
    %v137 = vsel %vm90, %v72, 0
    %v140 = vsel %vm90, %v73, 0
    %v143 = vsel %vm90, %v74, 0
    %v146 = vsel %vm90, %v75, 0
    %148 = vmatprep.subr.bf16.mxu0 0
    %149 = vmatpush1.bf16.msra.mxu0 %v88
    %150 = vmatprep.subr.bf16.mxu0 0
    %151 = vmatpush1.bf16.msra.mxu0 0
    %152 = vmatprep.subr.bf16.mxu0 0
    %153 = vmatpush1.bf16.msra.mxu0 0
    %154 = vmatprep.subr.bf16.mxu0 0
    %155 = vmatpush1.bf16.msra.mxu0 0
    %156 = vmatprep.subr.bf16.mxu0 0
    %157 = vmatpush1.bf16.msra.mxu0 0
    %158 = vmatprep.subr.bf16.mxu0 0
    %159 = vmatpush1.bf16.msra.mxu0 0
    %160 = vmatprep.subr.bf16.mxu0 0
    %161 = vmatpush1.bf16.msra.mxu0 0
    %162 = vmatprep.subr.bf16.mxu0 0
    %163 = vmatpush1.bf16.msra.mxu0 0
    %164 = vmatprep.subr.bf16.mxu0 0
    %165 = vmatpush1.bf16.msra.mxu0 0
    %166 = vmatprep.subr.bf16.mxu0 0
    %167 = vmatpush1.bf16.msra.mxu0 0
    %168 = vmatprep.subr.bf16.mxu0 0
    %169 = vmatpush1.bf16.msra.mxu0 0
    %170 = vmatprep.subr.bf16.mxu0 0
    %171 = vmatpush1.bf16.msra.mxu0 0
    %172 = vmatprep.subr.bf16.mxu0 0
    %173 = vmatpush1.bf16.msra.mxu0 0
    %174 = vmatprep.subr.bf16.mxu0 0
    %175 = vmatpush1.bf16.msra.mxu0 0
    %176 = vmatprep.subr.bf16.mxu0 0
    %177 = vmatpush1.bf16.msra.mxu0 0
    %178 = vmatprep.subr.bf16.mxu0 0
    %179 = vmatpush1.bf16.msra.mxu0 0
    %180 = vmatprep.mubr.bf16.mxu0 0
    %181 = vmatmul.mubr.bf16.gmra.mrb[0].mxu0 %v92
    %v182 = vpop.f32.mrb[0].mxu0
    %v183 = vadd.f32 %v83, %v182
    %v184 = vpop.f32.mrb[0].mxu0
    %v185 = vpop.f32.mrb[0].mxu0
    %v186 = vadd.f32 %v83, %v185
    %v187 = vpop.f32.mrb[0].mxu0
    %188 = vmatprep.mubr.bf16.mxu0 0
    %189 = vmatmul.mubr.bf16.gmra.mrb[0].mxu0 %v95
    %v190 = vpop.f32.mrb[0].mxu0
    %v191 = vadd.f32 %v83, %v190
    %v192 = vpop.f32.mrb[0].mxu0
    %v193 = vpop.f32.mrb[0].mxu0
    %v194 = vadd.f32 %v83, %v193
    %v195 = vpop.f32.mrb[0].mxu0
    %196 = vmatprep.mubr.bf16.mxu0 0
    %197 = vmatmul.mubr.bf16.gmra.mrb[0].mxu0 %v98
    %v198 = vpop.f32.mrb[0].mxu0
    %v199 = vadd.f32 %v83, %v198
    %v200 = vpop.f32.mrb[0].mxu0
    %v201 = vpop.f32.mrb[0].mxu0
    %v202 = vadd.f32 %v83, %v201
    %v203 = vpop.f32.mrb[0].mxu0
    %204 = vmatprep.mubr.bf16.mxu0 0
    %205 = vmatmul.mubr.bf16.gmra.mrb[0].mxu0 %v101
    %v206 = vpop.f32.mrb[0].mxu0
    %v207 = vadd.f32 %v83, %v206
    %v208 = vpop.f32.mrb[0].mxu0
    %v209 = vpop.f32.mrb[0].mxu0
    %v210 = vadd.f32 %v83, %v209
    %v211 = vpop.f32.mrb[0].mxu0
    %212 = vmatprep.mubr.bf16.mxu0 0
    %213 = vmatmul.mubr.bf16.gmra.mrb[0].mxu0 %v104
    %v214 = vpop.f32.mrb[0].mxu0
    %v215 = vadd.f32 %v83, %v214
    %v216 = vpop.f32.mrb[0].mxu0
    %v217 = vpop.f32.mrb[0].mxu0
    %v218 = vadd.f32 %v83, %v217
    %v219 = vpop.f32.mrb[0].mxu0
    %220 = vmatprep.mubr.bf16.mxu0 0
    %221 = vmatmul.mubr.bf16.gmra.mrb[0].mxu0 %v107
    %v222 = vpop.f32.mrb[0].mxu0
    %v223 = vadd.f32 %v83, %v222
    %v224 = vpop.f32.mrb[0].mxu0
    %v225 = vpop.f32.mrb[0].mxu0
    %v226 = vadd.f32 %v83, %v225
    %v227 = vpop.f32.mrb[0].mxu0
    %228 = vmatprep.mubr.bf16.mxu0 0
    %229 = vmatmul.mubr.bf16.gmra.mrb[0].mxu0 %v110
    %v230 = vpop.f32.mrb[0].mxu0
    %v231 = vadd.f32 %v83, %v230
    %v232 = vpop.f32.mrb[0].mxu0
    %v233 = vpop.f32.mrb[0].mxu0
    %v234 = vadd.f32 %v83, %v233
    %v235 = vpop.f32.mrb[0].mxu0
    %236 = vmatprep.mubr.bf16.mxu0 0
    %237 = vmatmul.mubr.bf16.gmra.mrb[0].mxu0 %v113
    %v238 = vpop.f32.mrb[0].mxu0
    %v239 = vadd.f32 %v83, %v238
    %v240 = vpop.f32.mrb[0].mxu0
    %v241 = vpop.f32.mrb[0].mxu0
    %v242 = vadd.f32 %v83, %v241
    %v243 = vpop.f32.mrb[0].mxu0
    %244 = vmatprep.mubr.bf16.mxu0 0
    %245 = vmatmul.mubr.bf16.gmra.mrb[0].mxu0 %v116
    %v246 = vpop.f32.mrb[0].mxu0
    %v247 = vadd.f32 %v83, %v246
    %v248 = vpop.f32.mrb[0].mxu0
    %v249 = vpop.f32.mrb[0].mxu0
    %v250 = vadd.f32 %v83, %v249
    %v251 = vpop.f32.mrb[0].mxu0
    %252 = vmatprep.mubr.bf16.mxu0 0
    %253 = vmatmul.mubr.bf16.gmra.mrb[0].mxu0 %v119
    %v254 = vpop.f32.mrb[0].mxu0
    %v255 = vadd.f32 %v83, %v254
    %v256 = vpop.f32.mrb[0].mxu0
    %v257 = vpop.f32.mrb[0].mxu0
    %v258 = vadd.f32 %v83, %v257
    %v259 = vpop.f32.mrb[0].mxu0
    %260 = vmatprep.mubr.bf16.mxu0 0
    %261 = vmatmul.mubr.bf16.gmra.mrb[0].mxu0 %v122
    %v262 = vpop.f32.mrb[0].mxu0
    %v263 = vadd.f32 %v83, %v262
    %v264 = vpop.f32.mrb[0].mxu0
    %v265 = vpop.f32.mrb[0].mxu0
    %v266 = vadd.f32 %v83, %v265
    %v267 = vpop.f32.mrb[0].mxu0
    %268 = vmatprep.mubr.bf16.mxu0 0
    %269 = vmatmul.mubr.bf16.gmra.mrb[0].mxu0 %v125
    %v270 = vpop.f32.mrb[0].mxu0
    %v271 = vadd.f32 %v83, %v270
    %v272 = vpop.f32.mrb[0].mxu0
    %v273 = vpop.f32.mrb[0].mxu0
    %v274 = vadd.f32 %v83, %v273
    %v275 = vpop.f32.mrb[0].mxu0
    %276 = vmatprep.mubr.bf16.mxu0 0
    %277 = vmatmul.mubr.bf16.gmra.mrb[0].mxu0 %v128
    %v278 = vpop.f32.mrb[0].mxu0
    %v279 = vadd.f32 %v83, %v278
    %v280 = vpop.f32.mrb[0].mxu0
    %v281 = vpop.f32.mrb[0].mxu0
    %v282 = vadd.f32 %v83, %v281
    %v283 = vpop.f32.mrb[0].mxu0
    %284 = vmatprep.mubr.bf16.mxu0 0
    %285 = vmatmul.mubr.bf16.gmra.mrb[0].mxu0 %v131
    %v286 = vpop.f32.mrb[0].mxu0
    %v287 = vadd.f32 %v83, %v286
    %v288 = vpop.f32.mrb[0].mxu0
    %v289 = vpop.f32.mrb[0].mxu0
    %v290 = vadd.f32 %v83, %v289
    %v291 = vpop.f32.mrb[0].mxu0
    %292 = vmatprep.mubr.bf16.mxu0 0
    %293 = vmatmul.mubr.bf16.gmra.mrb[0].mxu0 %v134
    %v294 = vpop.f32.mrb[0].mxu0
    %v295 = vadd.f32 %v83, %v294
    %v296 = vpop.f32.mrb[0].mxu0
    %v297 = vpop.f32.mrb[0].mxu0
    %v298 = vadd.f32 %v83, %v297
    %v299 = vpop.f32.mrb[0].mxu0
    %300 = vmatprep.mubr.bf16.mxu0 0
    %301 = vmatmul.mubr.bf16.gmra.mrb[0].mxu0 %v137
    %v302 = vpop.f32.mrb[0].mxu0
    %v303 = vadd.f32 %v83, %v302
    %v304 = vpop.f32.mrb[0].mxu0
    %v305 = vpop.f32.mrb[0].mxu0
    %v306 = vadd.f32 %v83, %v305
    %v307 = vpop.f32.mrb[0].mxu0
    %308 = vmatprep.mubr.bf16.mxu0 0
    %309 = vmatmul.mubr.bf16.gmra.mrb[0].mxu0 %v140
    %v310 = vpop.f32.mrb[0].mxu0
    %v311 = vadd.f32 %v83, %v310
    %v312 = vpop.f32.mrb[0].mxu0
    %v313 = vpop.f32.mrb[0].mxu0
    %v314 = vadd.f32 %v83, %v313
    %v315 = vpop.f32.mrb[0].mxu0
    %316 = vmatprep.mubr.bf16.mxu0 0
    %317 = vmatmul.mubr.bf16.gmra.mrb[0].mxu0 %v143
    %v318 = vpop.f32.mrb[0].mxu0
    %v319 = vadd.f32 %v83, %v318
    %v320 = vpop.f32.mrb[0].mxu0
    %v321 = vpop.f32.mrb[0].mxu0
    %v322 = vadd.f32 %v83, %v321
    %v323 = vpop.f32.mrb[0].mxu0
    %324 = vmatprep.mubr.bf16.mxu0 0
    %325 = vmatmul.mubr.bf16.gmra.mrb[0].mxu0 %v146
    %v326 = vpop.f32.mrb[0].mxu0
    %v327 = vadd.f32 %v83, %v326
    %v328 = vpop.f32.mrb[0].mxu0
    %v329 = vpop.f32.mrb[0].mxu0
    %v330 = vadd.f32 %v83, %v329
    %v331 = vpop.f32.mrb[0].mxu0
    %332 = vdwg.mxu0
    %v333 = vmax.f32 %v183, 0.0
    %v334 = vmax.f32 %v186, 0.0
    %v335 = vmax.f32 %v191, 0.0
    %v336 = vmax.f32 %v194, 0.0
    %v337 = vmax.f32 %v199, 0.0
    %v338 = vmax.f32 %v202, 0.0
    %v339 = vmax.f32 %v207, 0.0
    %v340 = vmax.f32 %v210, 0.0
    %v341 = vmax.f32 %v215, 0.0
    %v342 = vmax.f32 %v218, 0.0
    %v343 = vmax.f32 %v223, 0.0
    %v344 = vmax.f32 %v226, 0.0
    %v345 = vmax.f32 %v231, 0.0
    %v346 = vmax.f32 %v234, 0.0
    %v347 = vmax.f32 %v239, 0.0
    %v348 = vmax.f32 %v242, 0.0
    %v349 = vmax.f32 %v247, 0.0
    %v350 = vmax.f32 %v250, 0.0
    %v351 = vmax.f32 %v255, 0.0
    %v352 = vmax.f32 %v258, 0.0
    %v353 = vmax.f32 %v263, 0.0
    %v354 = vmax.f32 %v266, 0.0
    %v355 = vmax.f32 %v271, 0.0
    %v356 = vmax.f32 %v274, 0.0
    %v357 = vmax.f32 %v279, 0.0
    %v358 = vmax.f32 %v282, 0.0
    %v359 = vmax.f32 %v287, 0.0
    %v360 = vmax.f32 %v290, 0.0
    %v361 = vmax.f32 %v295, 0.0
    %v362 = vmax.f32 %v298, 0.0
    %v363 = vmax.f32 %v303, 0.0
    %v364 = vmax.f32 %v306, 0.0
    %v365 = vmax.f32 %v311, 0.0
    %v366 = vmax.f32 %v314, 0.0
    %v367 = vmax.f32 %v319, 0.0
    %v368 = vmax.f32 %v322, 0.0
    %v369 = vmax.f32 %v327, 0.0
    %v370 = vmax.f32 %v330, 0.0
    %v371 = vpack.c.bf16 %v334, %v333
    %v372 = vpack.c.bf16 %v336, %v335
    %v373 = vpack.c.bf16 %v338, %v337
    %v374 = vpack.c.bf16 %v340, %v339
    %v375 = vpack.c.bf16 %v342, %v341
    %v376 = vpack.c.bf16 %v344, %v343
    %v377 = vpack.c.bf16 %v346, %v345
    %v378 = vpack.c.bf16 %v348, %v347
    %v379 = vpack.c.bf16 %v350, %v349
    %v380 = vpack.c.bf16 %v352, %v351
    %v381 = vpack.c.bf16 %v354, %v353
    %v382 = vpack.c.bf16 %v356, %v355
    %v383 = vpack.c.bf16 %v358, %v357
    %v384 = vpack.c.bf16 %v360, %v359
    %v385 = vpack.c.bf16 %v362, %v361
    %v386 = vpack.c.bf16 %v364, %v363
    %v387 = vpack.c.bf16 %v366, %v365
    %v388 = vpack.c.bf16 %v368, %v367
    %v389 = vpack.c.bf16 %v370, %v369
    %v390 = vld [vmem:[%s2] sm:$0xf]
    %v391 = vld [vmem:[%s2 + $0x4] sm:$0xf]
    %v392 = vld [vmem:[%s2 + $0x8] sm:$0xf]
    %v393 = vld [vmem:[%s2 + $0xc] sm:$0xf]
    %v394 = vld [vmem:[%s2 + $0x10] sm:$0xf]
    %v395 = vld [vmem:[%s2 + $0x14] sm:$0xf]
    %v396 = vld [vmem:[%s2 + $0x18] sm:$0xf]
    %v397 = vld [vmem:[%s2 + $0x1c] sm:$0xf]
    %v398 = vld [vmem:[%s2 + $0x20] sm:$0xf]
    %v399 = vld [vmem:[%s2 + $0x24] sm:$0xf]
    %v400 = vld [vmem:[%s2 + $0x28] sm:$0xf]
    %v401 = vld [vmem:[%s2 + $0x2c] sm:$0xf]
    %v402 = vld [vmem:[%s2 + $0x30] sm:$0xf]
    %v403 = vld [vmem:[%s2 + $0x34] sm:$0xf]
    %v404 = vld [vmem:[%s2 + $0x38] sm:$0xf]
    %v405 = vld [vmem:[%s2 + $0x3c] sm:$0xf]
    %v406 = vlaneseq
    %v407 = vshrl.u32 %v406, 7
    %v408 = vsub.s32 0, %v407
    %v409 = vrot.slane %v77, %v408
    %v426 = vunpack.c.l.b16 %v390
    %v427 = vunpack.c.l.b16 %v391
    %v428 = vunpack.c.l.b16 %v392
    %v429 = vunpack.c.l.b16 %v393
    %v430 = vunpack.c.l.b16 %v394
    %v431 = vunpack.c.l.b16 %v395
    %v432 = vunpack.c.l.b16 %v396
    %v433 = vunpack.c.l.b16 %v397
    %v434 = vunpack.c.l.b16 %v398
    %v435 = vunpack.c.l.b16 %v399
    %v436 = vunpack.c.l.b16 %v400
    %v437 = vunpack.c.l.b16 %v401
    %v438 = vunpack.c.l.b16 %v402
    %v439 = vunpack.c.l.b16 %v403
    %v440 = vunpack.c.l.b16 %v404
    %v441 = vunpack.c.l.b16 %v405
    %v442 = vpack.c.b16 %v427, %v426
    %v443 = vpack.c.b16 %v429, %v428
    %v444 = vpack.c.b16 %v431, %v430
    %v445 = vpack.c.b16 %v433, %v432
    %v446 = vpack.c.b16 %v435, %v434
    %v447 = vpack.c.b16 %v437, %v436
    %v448 = vpack.c.b16 %v439, %v438
    %v449 = vpack.c.b16 %v441, %v440
    %458 = vmatprep.subr.bf16.mxu0 0
    %459 = vmatpush1.bf16.msra.mxu0 %v442
    %460 = vmatprep.subr.bf16.mxu0 0
    %461 = vmatpush1.bf16.msra.mxu0 %v443
    %462 = vmatprep.subr.bf16.mxu0 0
    %463 = vmatpush1.bf16.msra.mxu0 %v444
    %464 = vmatprep.subr.bf16.mxu0 0
    %465 = vmatpush1.bf16.msra.mxu0 %v445
    %466 = vmatprep.subr.bf16.mxu0 0
    %467 = vmatpush1.bf16.msra.mxu0 %v446
    %468 = vmatprep.subr.bf16.mxu0 0
    %469 = vmatpush1.bf16.msra.mxu0 %v447
    %470 = vmatprep.subr.bf16.mxu0 0
    %471 = vmatpush1.bf16.msra.mxu0 %v448
    %472 = vmatprep.subr.bf16.mxu0 0
    %473 = vmatpush1.bf16.msra.mxu0 %v449
    %474 = vmatprep.subr.bf16.mxu0 0
    %475 = vmatpush1.bf16.msra.mxu0 0
    %476 = vmatprep.subr.bf16.mxu0 0
    %477 = vmatpush1.bf16.msra.mxu0 0
    %478 = vmatprep.subr.bf16.mxu0 0
    %479 = vmatpush1.bf16.msra.mxu0 0
    %480 = vmatprep.subr.bf16.mxu0 0
    %481 = vmatpush1.bf16.msra.mxu0 0
    %482 = vmatprep.subr.bf16.mxu0 0
    %483 = vmatpush1.bf16.msra.mxu0 0
    %484 = vmatprep.subr.bf16.mxu0 0
    %485 = vmatpush1.bf16.msra.mxu0 0
    %486 = vmatprep.subr.bf16.mxu0 0
    %487 = vmatpush1.bf16.msra.mxu0 0
    %488 = vmatprep.subr.bf16.mxu0 0
    %489 = vmatpush1.bf16.msra.mxu0 0
    %490 = vmatprep.mubr.bf16.mxu0 0
    %491 = vmatmul.mubr.bf16.gmra.mrb[0].mxu0 %v371
    %v492 = vpop.f32.mrb[0].mxu0
    %v493 = vadd.f32 %v409, %v492
    %v494 = vpop.f32.mrb[0].mxu0
    %v495 = vpop.f32.mrb[0].mxu0
    %v496 = vadd.f32 %v409, %v495
    %v497 = vpop.f32.mrb[0].mxu0
    %498 = vmatprep.mubr.bf16.mxu0 0
    %499 = vmatmul.mubr.bf16.gmra.mrb[0].mxu0 %v372
    %v500 = vpop.f32.mrb[0].mxu0
    %v501 = vadd.f32 %v409, %v500
    %v502 = vpop.f32.mrb[0].mxu0
    %v503 = vpop.f32.mrb[0].mxu0
    %v504 = vadd.f32 %v409, %v503
    %v505 = vpop.f32.mrb[0].mxu0
    %506 = vmatprep.mubr.bf16.mxu0 0
    %507 = vmatmul.mubr.bf16.gmra.mrb[0].mxu0 %v373
    %v508 = vpop.f32.mrb[0].mxu0
    %v509 = vadd.f32 %v409, %v508
    %v510 = vpop.f32.mrb[0].mxu0
    %v511 = vpop.f32.mrb[0].mxu0
    %v512 = vadd.f32 %v409, %v511
    %v513 = vpop.f32.mrb[0].mxu0
    %514 = vmatprep.mubr.bf16.mxu0 0
    %515 = vmatmul.mubr.bf16.gmra.mrb[0].mxu0 %v374
    %v516 = vpop.f32.mrb[0].mxu0
    %v517 = vadd.f32 %v409, %v516
    %v518 = vpop.f32.mrb[0].mxu0
    %v519 = vpop.f32.mrb[0].mxu0
    %v520 = vadd.f32 %v409, %v519
    %v521 = vpop.f32.mrb[0].mxu0
    %522 = vmatprep.mubr.bf16.mxu0 0
    %523 = vmatmul.mubr.bf16.gmra.mrb[0].mxu0 %v375
    %v524 = vpop.f32.mrb[0].mxu0
    %v525 = vadd.f32 %v409, %v524
    %v526 = vpop.f32.mrb[0].mxu0
    %v527 = vpop.f32.mrb[0].mxu0
    %v528 = vadd.f32 %v409, %v527
    %v529 = vpop.f32.mrb[0].mxu0
    %530 = vmatprep.mubr.bf16.mxu0 0
    %531 = vmatmul.mubr.bf16.gmra.mrb[0].mxu0 %v376
    %v532 = vpop.f32.mrb[0].mxu0
    %v533 = vadd.f32 %v409, %v532
    %v534 = vpop.f32.mrb[0].mxu0
    %v535 = vpop.f32.mrb[0].mxu0
    %v536 = vadd.f32 %v409, %v535
    %v537 = vpop.f32.mrb[0].mxu0
    %538 = vmatprep.mubr.bf16.mxu0 0
    %539 = vmatmul.mubr.bf16.gmra.mrb[0].mxu0 %v377
    %v540 = vpop.f32.mrb[0].mxu0
    %v541 = vadd.f32 %v409, %v540
    %v542 = vpop.f32.mrb[0].mxu0
    %v543 = vpop.f32.mrb[0].mxu0
    %v544 = vadd.f32 %v409, %v543
    %v545 = vpop.f32.mrb[0].mxu0
    %546 = vmatprep.mubr.bf16.mxu0 0
    %547 = vmatmul.mubr.bf16.gmra.mrb[0].mxu0 %v378
    %v548 = vpop.f32.mrb[0].mxu0
    %v549 = vadd.f32 %v409, %v548
    %v550 = vpop.f32.mrb[0].mxu0
    %v551 = vpop.f32.mrb[0].mxu0
    %v552 = vadd.f32 %v409, %v551
    %v553 = vpop.f32.mrb[0].mxu0
    %554 = vmatprep.mubr.bf16.mxu0 0
    %555 = vmatmul.mubr.bf16.gmra.mrb[0].mxu0 %v379
    %v556 = vpop.f32.mrb[0].mxu0
    %v557 = vadd.f32 %v409, %v556
    %v558 = vpop.f32.mrb[0].mxu0
    %v559 = vpop.f32.mrb[0].mxu0
    %v560 = vadd.f32 %v409, %v559
    %v561 = vpop.f32.mrb[0].mxu0
    %562 = vmatprep.mubr.bf16.mxu0 0
    %563 = vmatmul.mubr.bf16.gmra.mrb[0].mxu0 %v380
    %v564 = vpop.f32.mrb[0].mxu0
    %v565 = vadd.f32 %v409, %v564
    %v566 = vpop.f32.mrb[0].mxu0
    %v567 = vpop.f32.mrb[0].mxu0
    %v568 = vadd.f32 %v409, %v567
    %v569 = vpop.f32.mrb[0].mxu0
    %570 = vmatprep.mubr.bf16.mxu0 0
    %571 = vmatmul.mubr.bf16.gmra.mrb[0].mxu0 %v381
    %v572 = vpop.f32.mrb[0].mxu0
    %v573 = vadd.f32 %v409, %v572
    %v574 = vpop.f32.mrb[0].mxu0
    %v575 = vpop.f32.mrb[0].mxu0
    %v576 = vadd.f32 %v409, %v575
    %v577 = vpop.f32.mrb[0].mxu0
    %578 = vmatprep.mubr.bf16.mxu0 0
    %579 = vmatmul.mubr.bf16.gmra.mrb[0].mxu0 %v382
    %v580 = vpop.f32.mrb[0].mxu0
    %v581 = vadd.f32 %v409, %v580
    %v582 = vpop.f32.mrb[0].mxu0
    %v583 = vpop.f32.mrb[0].mxu0
    %v584 = vadd.f32 %v409, %v583
    %v585 = vpop.f32.mrb[0].mxu0
    %586 = vmatprep.mubr.bf16.mxu0 0
    %587 = vmatmul.mubr.bf16.gmra.mrb[0].mxu0 %v383
    %v588 = vpop.f32.mrb[0].mxu0
    %v589 = vadd.f32 %v409, %v588
    %v590 = vpop.f32.mrb[0].mxu0
    %v591 = vpop.f32.mrb[0].mxu0
    %v592 = vadd.f32 %v409, %v591
    %v593 = vpop.f32.mrb[0].mxu0
    %594 = vmatprep.mubr.bf16.mxu0 0
    %595 = vmatmul.mubr.bf16.gmra.mrb[0].mxu0 %v384
    %v596 = vpop.f32.mrb[0].mxu0
    %v597 = vadd.f32 %v409, %v596
    %v598 = vpop.f32.mrb[0].mxu0
    %v599 = vpop.f32.mrb[0].mxu0
    %v600 = vadd.f32 %v409, %v599
    %v601 = vpop.f32.mrb[0].mxu0
    %602 = vmatprep.mubr.bf16.mxu0 0
    %603 = vmatmul.mubr.bf16.gmra.mrb[0].mxu0 %v385
    %v604 = vpop.f32.mrb[0].mxu0
    %v605 = vadd.f32 %v409, %v604
    %v606 = vpop.f32.mrb[0].mxu0
    %v607 = vpop.f32.mrb[0].mxu0
    %v608 = vadd.f32 %v409, %v607
    %v609 = vpop.f32.mrb[0].mxu0
    %610 = vmatprep.mubr.bf16.mxu0 0
    %611 = vmatmul.mubr.bf16.gmra.mrb[0].mxu0 %v386
    %v612 = vpop.f32.mrb[0].mxu0
    %v613 = vadd.f32 %v409, %v612
    %v614 = vpop.f32.mrb[0].mxu0
    %v615 = vpop.f32.mrb[0].mxu0
    %v616 = vadd.f32 %v409, %v615
    %v617 = vpop.f32.mrb[0].mxu0
    %618 = vmatprep.mubr.bf16.mxu0 0
    %619 = vmatmul.mubr.bf16.gmra.mrb[0].mxu0 %v387
    %v620 = vpop.f32.mrb[0].mxu0
    %v621 = vadd.f32 %v409, %v620
    %v622 = vpop.f32.mrb[0].mxu0
    %v623 = vpop.f32.mrb[0].mxu0
    %v624 = vadd.f32 %v409, %v623
    %v625 = vpop.f32.mrb[0].mxu0
    %626 = vmatprep.mubr.bf16.mxu0 0
    %627 = vmatmul.mubr.bf16.gmra.mrb[0].mxu0 %v388
    %v628 = vpop.f32.mrb[0].mxu0
    %v629 = vadd.f32 %v409, %v628
    %v630 = vpop.f32.mrb[0].mxu0
    %v631 = vpop.f32.mrb[0].mxu0
    %v632 = vadd.f32 %v409, %v631
    %v633 = vpop.f32.mrb[0].mxu0
    %634 = vmatprep.mubr.bf16.mxu0 0
    %635 = vmatmul.mubr.bf16.gmra.mrb[0].mxu0 %v389
    %v636 = vpop.f32.mrb[0].mxu0
    %v637 = vadd.f32 %v409, %v636
    %v638 = vpop.f32.mrb[0].mxu0
    %v639 = vpop.f32.mrb[0].mxu0
    %v640 = vadd.f32 %v409, %v639
    %v641 = vpop.f32.mrb[0].mxu0
    %642 = vdwg.mxu0
    %v643 = vpack.c.bf16 %v496, %v493
    %v644 = vpack.c.bf16 %v504, %v501
    %v645 = vpack.c.bf16 %v512, %v509
    %v646 = vpack.c.bf16 %v520, %v517
    %v647 = vpack.c.bf16 %v528, %v525
    %v648 = vpack.c.bf16 %v536, %v533
    %v649 = vpack.c.bf16 %v544, %v541
    %v650 = vpack.c.bf16 %v552, %v549
    %v651 = vpack.c.bf16 %v560, %v557
    %v652 = vpack.c.bf16 %v568, %v565
    %v653 = vpack.c.bf16 %v576, %v573
    %v654 = vpack.c.bf16 %v584, %v581
    %v655 = vpack.c.bf16 %v592, %v589
    %v656 = vpack.c.bf16 %v600, %v597
    %v657 = vpack.c.bf16 %v608, %v605
    %v658 = vpack.c.bf16 %v616, %v613
    %v659 = vpack.c.bf16 %v624, %v621
    %v660 = vpack.c.bf16 %v632, %v629
    %v661 = vpack.c.bf16 %v640, %v637
    %v681 = vunpack.c.l.b16 %v643
    %v682 = vunpack.c.h.b16 %v643
    %v683 = vunpack.c.l.b16 %v644
    %v684 = vunpack.c.h.b16 %v644
    %v685 = vunpack.c.l.b16 %v645
    %v686 = vunpack.c.h.b16 %v645
    %v687 = vunpack.c.l.b16 %v646
    %v688 = vunpack.c.h.b16 %v646
    %v689 = vunpack.c.l.b16 %v647
    %v690 = vunpack.c.h.b16 %v647
    %v691 = vunpack.c.l.b16 %v648
    %v692 = vunpack.c.h.b16 %v648
    %v693 = vunpack.c.l.b16 %v649
    %v694 = vunpack.c.h.b16 %v649
    %v695 = vunpack.c.l.b16 %v650
    %v696 = vunpack.c.h.b16 %v650
    %v697 = vunpack.c.l.b16 %v651
    %v698 = vunpack.c.h.b16 %v651
    %v699 = vunpack.c.l.b16 %v652
    %v700 = vunpack.c.h.b16 %v652
    %v701 = vunpack.c.l.b16 %v653
    %v702 = vunpack.c.h.b16 %v653
    %v703 = vunpack.c.l.b16 %v654
    %v704 = vunpack.c.h.b16 %v654
    %v705 = vunpack.c.l.b16 %v655
    %v706 = vunpack.c.h.b16 %v655
    %v707 = vunpack.c.l.b16 %v656
    %v708 = vunpack.c.h.b16 %v656
    %v709 = vunpack.c.l.b16 %v657
    %v710 = vunpack.c.h.b16 %v657
    %v711 = vunpack.c.l.b16 %v658
    %v712 = vunpack.c.h.b16 %v658
    %v713 = vunpack.c.l.b16 %v659
    %v714 = vunpack.c.h.b16 %v659
    %v715 = vunpack.c.l.b16 %v660
    %v716 = vunpack.c.h.b16 %v660
    %v717 = vunpack.c.l.b16 %v661
    %v718 = vunpack.c.h.b16 %v661
    %v719 = vpack.c.b16 %v681, %v681
    %v720 = vpack.c.b16 %v682, %v682
    %v721 = vpack.c.b16 %v683, %v683
    %v722 = vpack.c.b16 %v684, %v684
    %v723 = vpack.c.b16 %v685, %v685
    %v724 = vpack.c.b16 %v686, %v686
    %v725 = vpack.c.b16 %v687, %v687
    %v726 = vpack.c.b16 %v688, %v688
    %v727 = vpack.c.b16 %v689, %v689
    %v728 = vpack.c.b16 %v690, %v690
    %v729 = vpack.c.b16 %v691, %v691
    %v730 = vpack.c.b16 %v692, %v692
    %v731 = vpack.c.b16 %v693, %v693
    %v732 = vpack.c.b16 %v694, %v694
    %v733 = vpack.c.b16 %v695, %v695
    %v734 = vpack.c.b16 %v696, %v696
    %v735 = vpack.c.b16 %v697, %v697
    %v736 = vpack.c.b16 %v698, %v698
    %v737 = vpack.c.b16 %v699, %v699
    %v738 = vpack.c.b16 %v700, %v700
    %v739 = vpack.c.b16 %v701, %v701
    %v740 = vpack.c.b16 %v702, %v702
    %v741 = vpack.c.b16 %v703, %v703
    %v742 = vpack.c.b16 %v704, %v704
    %v743 = vpack.c.b16 %v705, %v705
    %v744 = vpack.c.b16 %v706, %v706
    %v745 = vpack.c.b16 %v707, %v707
    %v746 = vpack.c.b16 %v708, %v708
    %v747 = vpack.c.b16 %v709, %v709
    %v748 = vpack.c.b16 %v710, %v710
    %v749 = vpack.c.b16 %v711, %v711
    %v750 = vpack.c.b16 %v712, %v712
    %v751 = vpack.c.b16 %v713, %v713
    %v752 = vpack.c.b16 %v714, %v714
    %v753 = vpack.c.b16 %v715, %v715
    %v754 = vpack.c.b16 %v716, %v716
    %v755 = vpack.c.b16 %v717, %v717
    %v756 = vpack.c.b16 %v718, %v718
    %795 = vst [vmem:[#allocation2] sm:$0xf] %v719
    %796 = vst [vmem:[#allocation2 + $0x4] sm:$0xf] %v720
    %797 = vst [vmem:[#allocation2 + $0x8] sm:$0xf] %v721
    %798 = vst [vmem:[#allocation2 + $0xc] sm:$0xf] %v722
    %799 = vst [vmem:[#allocation2 + $0x10] sm:$0xf] %v723
    %800 = vst [vmem:[#allocation2 + $0x14] sm:$0xf] %v724
    %801 = vst [vmem:[#allocation2 + $0x18] sm:$0xf] %v725
    %802 = vst [vmem:[#allocation2 + $0x1c] sm:$0xf] %v726
    %803 = vst [vmem:[#allocation2 + $0x20] sm:$0xf] %v727
    %804 = vst [vmem:[#allocation2 + $0x24] sm:$0xf] %v728
    %805 = vst [vmem:[#allocation2 + $0x28] sm:$0xf] %v729
    %806 = vst [vmem:[#allocation2 + $0x2c] sm:$0xf] %v730
    %807 = vst [vmem:[#allocation2 + $0x30] sm:$0xf] %v731
    %808 = vst [vmem:[#allocation2 + $0x34] sm:$0xf] %v732
    %809 = vst [vmem:[#allocation2 + $0x38] sm:$0xf] %v733
    %810 = vst [vmem:[#allocation2 + $0x3c] sm:$0xf] %v734
    %811 = vst [vmem:[#allocation2 + $0x40] sm:$0xf] %v735
    %812 = vst [vmem:[#allocation2 + $0x44] sm:$0xf] %v736
    %813 = vst [vmem:[#allocation2 + $0x48] sm:$0xf] %v737
    %814 = vst [vmem:[#allocation2 + $0x4c] sm:$0xf] %v738
    %815 = vst [vmem:[#allocation2 + $0x50] sm:$0xf] %v739
    %816 = vst [vmem:[#allocation2 + $0x54] sm:$0xf] %v740
    %817 = vst [vmem:[#allocation2 + $0x58] sm:$0xf] %v741
    %818 = vst [vmem:[#allocation2 + $0x5c] sm:$0xf] %v742
    %819 = vst [vmem:[#allocation2 + $0x60] sm:$0xf] %v743
    %820 = vst [vmem:[#allocation2 + $0x64] sm:$0xf] %v744
    %821 = vst [vmem:[#allocation2 + $0x68] sm:$0xf] %v745
    %822 = vst [vmem:[#allocation2 + $0x6c] sm:$0xf] %v746
    %823 = vst [vmem:[#allocation2 + $0x70] sm:$0xf] %v747
    %824 = vst [vmem:[#allocation2 + $0x74] sm:$0xf] %v748
    %825 = vst [vmem:[#allocation2 + $0x78] sm:$0xf] %v749
    %826 = vst [vmem:[#allocation2 + $0x7c] sm:$0xf] %v750
    %827 = vst [vmem:[#allocation2 + $0x80] sm:$0xf] %v751
    %828 = vst [vmem:[#allocation2 + $0x84] sm:$0xf] %v752
    %829 = vst [vmem:[#allocation2 + $0x88] sm:$0xf] %v753
    %830 = vst [vmem:[#allocation2 + $0x8c] sm:$0xf] %v754
    %831 = vst [vmem:[#allocation2 + $0x90] sm:$0xf] %v755
    %832 = vst [vmem:[#allocation2 + $0x94] sm:$0xf] %v756
    // Predicated region
    $region18: #{tpu_custom_call.1} parent=1 // pred_check
      _
    $region19: #{tpu_custom_call.1} parent=1 // pred_check_branch
      %834 = sbr.rel (0) target = $region21
    $region20: #{tpu_custom_call.1} parent=1 // pred_region
      %s836 = ssub.s32 2432, 2432
      %837 = vsyncadd [#allocation3], %s836
      %s838 = sshll.u32 [#allocation2], 4
      %s839 = int_to_ptr.vmem [resolvable:$true] %s838
      %844 = dma.vmem_to_hbm [thread:$0]  %s839, 2432, %s4, [#allocation3], 64, 64, 4
    $region21: #{tpu_custom_call.1} parent=1 // pred_fallthru
      _
    // Predicated region
    $region22: #{tpu_custom_call.1} parent=1 // pred_check
      _
    $region23: #{tpu_custom_call.1} parent=1 // pred_check_branch
      %846 = sbr.rel (0) target = $region25
    $region24: #{tpu_custom_call.1} parent=1 // pred_region
      %847 = dma.done [#allocation3], 2432
    $region25: #{tpu_custom_call.1} parent=1 // pred_fallthru
      _
    %848 = vsyncpa [#allocation3], 1

</llo_original>
